<compile_context>
chip_gen: v7x
topology: tpu7x:2x2x1
jax: 0.10.0
libtpu: 0.0.40
codegen_flags: <defaults>
</compile_context>

<pallas_src>
import math
import jax
import jax.numpy as jnp
from jax import lax
from jax.experimental import pallas as pl
from jax.experimental.pallas import tpu as pltpu

EPS = 1e-5                        # config.layer_norm_eps
VMEM_BUDGET = 44 * 1024 * 1024    # conservative: fits v7x (64 MiB/TC) with headroom


# ----------------------- tiling / budget helpers -----------------------
def _pick_tile(full, target, floor):
    """Largest tile <= target that divides `full` (halving search); else full extent."""
    if full <= target:
        return full
    t = target
    while t >= floor:
        if full % t == 0:
            return t
        t //= 2
    return full  # TODO(synk): non power-of-two dims fall back to the full extent


def _tile_rows(full, target=512):   # sublane-dim tiles: multiple of 8 (or full)
    return _pick_tile(full, target, 8)


def _tile_lanes(full, target=512):  # lane-dim tiles: multiple of 128 (or full)
    return _pick_tile(full, target, 128)


def _fit(bytes_fn, tiles, fulls, floors):
    """Halve tiles (in the given priority order) until bytes_fn fits VMEM_BUDGET."""
    tiles = list(tiles)
    progress = True
    while bytes_fn(*tiles) > VMEM_BUDGET and progress:
        progress = False
        for i, t in enumerate(tiles):
            if t > floors[i] and t % 2 == 0 and fulls[i] % (t // 2) == 0:
                tiles[i] = t // 2
                progress = True
                break
    return tuple(tiles)


def _params(sem, vmem_bytes):
    return pltpu.CompilerParams(
        dimension_semantics=sem,
        vmem_limit_bytes=int(min(max(vmem_bytes + (4 << 20), 32 << 20), 96 << 20)))


# ----------------------- 1) fused RMSNorm + QKV projection -----------------------
def rmsnorm_qkv_kernel(x_ref, g_ref, w_ref, o_ref, xn_sc):
    @pl.when(pl.program_id(1) == 0)                          # norm once per row tile
    def _():
        x = x_ref[...].astype(jnp.float32)
        inv = lax.rsqrt(jnp.mean(x * x, axis=-1, keepdims=True) + EPS)
        xn_sc[...] = ((x * inv) * g_ref[...]).astype(jnp.bfloat16)

    o_ref[...] = jnp.dot(xn_sc[...], w_ref[...],             # bf16 MXU, f32 acc
                         preferred_element_type=jnp.float32).astype(o_ref.dtype)


def rmsnorm_qkv(x2d, g, wqkv):
    M, D = x2d.shape
    N = wqkv.shape[1]

    def nbytes(tn, tm):
        return (2 * tm * D * 4 + 2 * D * 4 + 2 * D * tn * 2
                + 2 * tm * tn * 2 + tm * D * 2)

    tn, tm = _fit(nbytes, (_tile_lanes(N), _tile_rows(M)), (N, M), (128, 8))
    return pl.pallas_call(
        rmsnorm_qkv_kernel,
        out_shape=jax.ShapeDtypeStruct((M, N), jnp.bfloat16),
        grid=(M // tm, N // tn),
        in_specs=[pl.BlockSpec((tm, D), lambda m, n: (m, 0)),
                  pl.BlockSpec((1, D), lambda m, n: (0, 0)),
                  pl.BlockSpec((D, tn), lambda m, n: (0, n))],
        out_specs=pl.BlockSpec((tm, tn), lambda m, n: (m, n)),
        scratch_shapes=[pltpu.VMEM((tm, D), jnp.bfloat16)],
        compiler_params=_params(("parallel", "arbitrary"), nbytes(tn, tm)),
    )(x2d, g, wqkv)


# ----------------------- 2) flash-style GQA attention -----------------------
def attention_kernel(q_ref, k_ref, v_ref, o_ref, m_sc, l_sc, acc_sc):
    kv = pl.program_id(2)

    @pl.when(kv == 0)
    def _():
        m_sc[...] = jnp.full_like(m_sc, -jnp.inf)
        l_sc[...] = jnp.zeros_like(l_sc)
        acc_sc[...] = jnp.zeros_like(acc_sc)

    q = q_ref[0]                                              # (tq, hd) bf16, pre-scaled
    k = k_ref[0]                                              # (tk, hd) bf16
    v = v_ref[0]                                              # (tk, hd) bf16

    # q @ k^T without an explicit transpose: contract the hd axes directly.
    s = lax.dot_general(q, k, (((1,), (1,)), ((), ())),
                        preferred_element_type=jnp.float32)   # (tq, tk) f32

    m_prev = m_sc[...]
    m_new = jnp.maximum(m_prev, jnp.max(s, axis=-1, keepdims=True))
    alpha = jnp.exp(m_prev - m_new)
    p = jnp.exp(s - m_new)                                    # f32 EUP
    l_sc[...] = alpha * l_sc[...] + jnp.sum(p, axis=-1, keepdims=True)
    acc_sc[...] = alpha * acc_sc[...] + jnp.dot(p.astype(jnp.bfloat16), v,
                                                preferred_element_type=jnp.float32)
    m_sc[...] = m_new

    @pl.when(kv == pl.num_programs(2) - 1)
    def _():
        inv_l = pl.reciprocal(l_sc[...], approx=True)         # EUP slot, off the VALU
        o_ref[0] = (acc_sc[...] * inv_l).astype(o_ref.dtype)


def attention_core(q, k, v):
    # q: (B*Hkv, R=n_rep*S, hd) bf16; k, v: (B*Hkv, S, hd) bf16 -- KV never repeated.
    BKV, R, hd = q.shape
    S = k.shape[1]

    def nbytes(tk, tq):
        return (2 * tq * hd * 2 + 2 * 2 * tk * hd * 2 + 2 * tq * hd * 2
                + 2 * tq * 4 + tq * hd * 4)

    tk, tq = _fit(nbytes, (_tile_rows(S), _tile_rows(R)), (S, R), (8, 8))
    q_spec = pl.BlockSpec((1, tq, hd), lambda b, qi, ki: (b, qi, 0))
    kv_spec = pl.BlockSpec((1, tk, hd), lambda b, qi, ki: (b, ki, 0))
    return pl.pallas_call(
        attention_kernel,
        out_shape=jax.ShapeDtypeStruct((BKV, R, hd), jnp.bfloat16),
        grid=(BKV, R // tq, S // tk),
        in_specs=[q_spec, kv_spec, kv_spec],
        out_specs=q_spec,
        scratch_shapes=[pltpu.VMEM((tq, 1), jnp.float32),
                        pltpu.VMEM((tq, 1), jnp.float32),
                        pltpu.VMEM((tq, hd), jnp.float32)],
        compiler_params=_params(("parallel", "parallel", "arbitrary"),
                                nbytes(tk, tq)),
    )(q, k, v)


# ----------------------- 3) output projection + residual -----------------------
def out_proj_kernel(a_ref, w_ref, res_ref, o_ref):
    o_ref[...] = jnp.dot(a_ref[...], w_ref[...],
                         preferred_element_type=jnp.float32) + res_ref[...]


def out_proj_residual(a2d, w, res2d):
    M, K = a2d.shape
    N = w.shape[1]

    def nbytes(tn, tm):
        return 2 * tm * K * 2 + 2 * K * tn * 2 + 2 * tm * tn * 4 + 2 * tm * tn * 4

    tn, tm = _fit(nbytes, (_tile_lanes(N), _tile_rows(M)), (N, M), (128, 8))
    return pl.pallas_call(
        out_proj_kernel,
        out_shape=jax.ShapeDtypeStruct((M, N), jnp.float32),
        grid=(M // tm, N // tn),
        in_specs=[pl.BlockSpec((tm, K), lambda m, n: (m, 0)),
                  pl.BlockSpec((K, tn), lambda m, n: (0, n)),
                  pl.BlockSpec((tm, tn), lambda m, n: (m, n))],
        out_specs=pl.BlockSpec((tm, tn), lambda m, n: (m, n)),
        compiler_params=_params(("parallel", "parallel"), nbytes(tn, tm)),
    )(a2d, w, res2d)


# ----------------------- 4) fused RMSNorm + SwiGLU FFN + residual -----------------------
def rmsnorm_ffn_kernel(x_ref, g_ref, w13_ref, w2_ref, o_ref, xn_sc, acc_sc):
    hh = pl.program_id(1)

    @pl.when(hh == 0)
    def _():
        x = x_ref[...].astype(jnp.float32)
        inv = lax.rsqrt(jnp.mean(x * x, axis=-1, keepdims=True) + EPS)
        xn_sc[...] = ((x * inv) * g_ref[...]).astype(jnp.bfloat16)
        acc_sc[...] = jnp.zeros_like(acc_sc)

    xn = xn_sc[...]                                           # (tm, D) bf16
    h1 = jnp.dot(xn, w13_ref[0], preferred_element_type=jnp.float32)
    h3 = jnp.dot(xn, w13_ref[1], preferred_element_type=jnp.float32)
    swiglu = (h1 * jax.nn.sigmoid(h1)) * h3                   # silu(w1 x) * (w3 x), f32
    acc_sc[...] += jnp.dot(swiglu.astype(jnp.bfloat16), w2_ref[...],
                           preferred_element_type=jnp.float32)

    @pl.when(hh == pl.num_programs(1) - 1)
    def _():
        o_ref[...] = acc_sc[...] + x_ref[...]                 # second residual fused


def ffn_residual(x2d, g, w13, w2):
    M, D = x2d.shape
    Hd = w13.shape[2]

    def nbytes(th, tm):
        return (2 * tm * D * 4 + 2 * D * 4 + 2 * 2 * D * th * 2 + 2 * th * D * 2
                + 2 * tm * D * 4 + tm * D * 2 + tm * D * 4)

    th, tm = _fit(nbytes, (_tile_lanes(Hd), _tile_rows(M)), (Hd, M), (128, 8))
    return pl.pallas_call(
        rmsnorm_ffn_kernel,
        out_shape=jax.ShapeDtypeStruct((M, D), jnp.float32),
        grid=(M // tm, Hd // th),
        in_specs=[pl.BlockSpec((tm, D), lambda m, h: (m, 0)),
                  pl.BlockSpec((1, D), lambda m, h: (0, 0)),
                  pl.BlockSpec((2, D, th), lambda m, h: (0, 0, h)),   # stacked w1/w3
                  pl.BlockSpec((th, D), lambda m, h: (h, 0))],
        out_specs=pl.BlockSpec((tm, D), lambda m, h: (m, 0)),
        scratch_shapes=[pltpu.VMEM((tm, D), jnp.bfloat16),    # normalized x
                        pltpu.VMEM((tm, D), jnp.float32)],    # f32 accumulator
        compiler_params=_params(("parallel", "arbitrary"), nbytes(th, tm)),
    )(x2d, g, w13, w2)


# ----------------------- Rotary embedding (wrapper JAX glue) -----------------------
def apply_rotary_emb(q, k, head_dim, max_seq_len, theta=10000.0):
    # Interleaved even/odd pair rotation (Meta/minllama style); f32 math, keeps dtype.
    # TODO(synk): could be fused into the attention kernel via a half-split layout +
    # pltpu.roll (column-permuted wq/wk); kept in wrapper JAX for robustness.
    del max_seq_len
    S = q.shape[1]
    inv_freq = 1.0 / (theta ** (jnp.arange(0, head_dim, 2, dtype=jnp.float32) / head_dim))
    t = jnp.arange(S, dtype=jnp.float32)
    freqs = jnp.outer(t, inv_freq)                            # (S, hd/2)
    cos = jnp.cos(freqs)[None, :, None, :]
    sin = jnp.sin(freqs)[None, :, None, :]

    def rot(x):
        xf = x.astype(jnp.float32)
        xr, xi = xf[..., 0::2], xf[..., 1::2]
        out = jnp.stack([xr * cos - xi * sin, xr * sin + xi * cos], axis=-1)
        return out.reshape(x.shape).astype(x.dtype)

    return rot(q), rot(k)


# ----------------------- Full LlamaLayer forward -----------------------
def llama_layer(x, params):
    B, S, D = x.shape
    H, Hkv = params["n_heads"], params["n_kv_heads"]
    hd = D // H
    n_rep = H // Hkv
    M = B * S
    x2d = x.reshape(M, D)

    # 1+2a) RMSNorm fused into a single QKV projection (bf16 wq|wk|wv, pre-fused).
    Nq, Nkv = H * hd, Hkv * hd
    qkv = rmsnorm_qkv(x2d, params["attn_norm_w"], params["wqkv"])   # (M, Nq+2*Nkv) bf16

    q = qkv[:, :Nq].reshape(B, S, H, hd)
    k = qkv[:, Nq:Nq + Nkv].reshape(B, S, Hkv, hd)
    v = qkv[:, Nq + Nkv:].reshape(B, S, Hkv, hd)
    q, k = apply_rotary_emb(q, k, hd, params["max_seq_len"])        # stays bf16

    # GQA: fold the n_rep query heads into the q row axis so each K/V tile is
    # DMA'd once per KV head.  Query head h == kvh * n_rep + rep (repeat_interleave).
    q = q.transpose(0, 2, 1, 3).reshape(B * Hkv, n_rep * S, hd)     # bf16 transpose
    k = k.transpose(0, 2, 1, 3).reshape(B * Hkv, S, hd)
    v = v.transpose(0, 2, 1, 3).reshape(B * Hkv, S, hd)

    o = attention_core(q, k, v)                                     # (B*Hkv, n_rep*S, hd) bf16
    o = o.reshape(B, H, S, hd).transpose(0, 2, 1, 3).reshape(M, H * hd)

    # 2b+3) output projection with first residual fused (dropout=0.0 -> identity).
    attn_res = out_proj_residual(o, params["wo"], x2d)              # (M, D) f32

    # 4+5) ffn RMSNorm + SwiGLU FFN (hidden-dim tiled) + second residual, fused.
    out = ffn_residual(attn_res, params["ffn_norm_w"], params["w13"], params["w2"])
    return out.reshape(B, S, D)


# ----------------------- params + pure-JAX reference -----------------------
def init_params(key, dim, n_heads, n_kv_heads, hidden_dim, max_seq_len):
    head_dim = dim // n_heads
    ks = jax.random.split(key, 7)
    scale = 0.02
    wq = scale * jax.random.normal(ks[0], (dim, n_heads * head_dim), jnp.float32)
    wk = scale * jax.random.normal(ks[1], (dim, n_kv_heads * head_dim), jnp.float32)
    wv = scale * jax.random.normal(ks[2], (dim, n_kv_heads * head_dim), jnp.float32)
    wo = scale * jax.random.normal(ks[3], (n_heads * head_dim, dim), jnp.float32)
    w1 = scale * jax.random.normal(ks[4], (dim, hidden_dim), jnp.float32)
    w3 = scale * jax.random.normal(ks[5], (dim, hidden_dim), jnp.float32)
    w2 = scale * jax.random.normal(ks[6], (hidden_dim, dim), jnp.float32)
    # Fuse ONCE at setup (not per forward): wq|wk|wv concat with the 1/sqrt(hd)
    # attention scale folded into wq, w1/w3 stacked; store all weights as bf16.
    wqkv = jnp.concatenate([wq / math.sqrt(head_dim), wk, wv], axis=1).astype(jnp.bfloat16)
    w13 = jnp.stack([w1, w3], axis=0).astype(jnp.bfloat16)
    return {
        "n_heads": n_heads,
        "n_kv_heads": n_kv_heads,
        "max_seq_len": max_seq_len,
        "attn_norm_w": jnp.ones((1, dim), jnp.float32),
        "ffn_norm_w": jnp.ones((1, dim), jnp.float32),
        "wqkv": wqkv,                       # (dim, (H+2*Hkv)*hd) bf16
        "wo": wo.astype(jnp.bfloat16),      # (H*hd, dim) bf16
        "w13": w13,                         # (2, dim, hidden_dim) bf16
        "w2": w2.astype(jnp.bfloat16),      # (hidden_dim, dim) bf16
    }


def llama_layer_ref(x, params):
    """Pure-JAX f32 reference (same bf16-stored weights), mirrors the PyTorch layer."""
    B, S, D = x.shape
    H, Hkv = params["n_heads"], params["n_kv_heads"]
    hd = D // H
    n_rep = H // Hkv
    wqkv = params["wqkv"].astype(jnp.float32)
    wo = params["wo"].astype(jnp.float32)
    w13 = params["w13"].astype(jnp.float32)
    w2 = params["w2"].astype(jnp.float32)

    def rms(y, g):
        yf = y.astype(jnp.float32)
        return yf * lax.rsqrt(jnp.mean(yf * yf, axis=-1, keepdims=True) + EPS) * g[0]

    xn = rms(x, params["attn_norm_w"])
    qkv = xn @ wqkv
    Nq, Nkv = H * hd, Hkv * hd
    q = qkv[..., :Nq].reshape(B, S, H, hd)
    k = qkv[..., Nq:Nq + Nkv].reshape(B, S, Hkv, hd)
    v = qkv[..., Nq + Nkv:].reshape(B, S, Hkv, hd)
    q, k = apply_rotary_emb(q, k, hd, params["max_seq_len"])
    k = jnp.repeat(k, n_rep, axis=2)        # torch.repeat_interleave semantics
    v = jnp.repeat(v, n_rep, axis=2)
    q, k, v = (t.transpose(0, 2, 1, 3) for t in (q, k, v))
    scores = jnp.einsum("bhqd,bhkd->bhqk", q, k)   # 1/sqrt(hd) already folded into wq
    attn = jax.nn.softmax(scores, axis=-1)         # no causal mask (matches reference)
    o = jnp.einsum("bhqk,bhkd->bhqd", attn, v)
    o = o.transpose(0, 2, 1, 3).reshape(B, S, H * hd)
    attn_res = o @ wo + x
    xn2 = rms(attn_res, params["ffn_norm_w"])
    h1, h3 = xn2 @ w13[0], xn2 @ w13[1]
    return attn_res + (jax.nn.silu(h1) * h3) @ w2


if __name__ == "__main__":
    # Small LlamaConfig: dim=32, n_heads=4, n_kv_heads=2, max_seq_len=16,
    # hidden_dim=None, multiple_of=32 -> hidden_dim = 96, dropout=0.0
    B, S, D = 2, 8, 32
    n_heads, n_kv_heads = 4, 2
    hidden_dim = 32 * ((int(2 * (4 * D) / 3) + 31) // 32)      # = 96
    max_seq_len = 16

    key = jax.random.PRNGKey(0)
    pkey, xkey = jax.random.split(key)
    params = init_params(pkey, D, n_heads, n_kv_heads, hidden_dim, max_seq_len)
    x = jax.random.normal(xkey, (B, S, D), jnp.float32)

    out = llama_layer(x, params)
    jax.block_until_ready(out)
    assert out.shape == (B, S, D)
    assert bool(jnp.all(jnp.isfinite(out)))

    ref = llama_layer_ref(x, params)
    err = float(jnp.max(jnp.abs(out - ref)))
    assert err < 3e-2, err          # bf16 storage / approx-reciprocal tolerance
    print("KERNEL_OK")
</pallas_src>

<mosaic_0001>
module attributes {stable_mosaic.version = 11 : i64} {
  func.func @rmsnorm_qkv_kernel(%arg0: i32, %arg1: i32, %arg2: memref<16x32xf32, #tpu.memory_space<vmem>>, %arg3: memref<1x32xf32, #tpu.memory_space<vmem>>, %arg4: memref<32x64xbf16, #tpu.memory_space<vmem>>, %arg5: memref<16x64xbf16, #tpu.memory_space<vmem>>, %arg6: memref<16x32xbf16, #tpu.memory_space<vmem>>) attributes {dimension_semantics = [#tpu.dimension_semantics<parallel>, #tpu.dimension_semantics<arbitrary>], iteration_bounds = array<i64: 1, 1>, scalar_prefetch = 0 : i64, scratch_operands = 1 : i64, tpu.core_type = #tpu.core_type<tc>, window_params = [{transform_indices = @transform_0, window_bounds = array<i64: 16, 32>}, {pipeline_mode = #tpu.pipeline_mode<synchronous>, transform_indices = @transform_1, window_bounds = array<i64: 1, 32>}, {transform_indices = @transform_2, window_bounds = array<i64: 32, 64>}, {transform_indices = @transform_3, window_bounds = array<i64: 16, 64>}]} {
    %c0_i32 = arith.constant 0 : i32
    %0 = arith.cmpi eq, %arg1, %c0_i32 : i32
    %1 = arith.extui %0 : i1 to i32
    %c0_i32_0 = arith.constant 0 : i32
    %2 = arith.cmpi ne, %1, %c0_i32_0 : i32
    scf.if %2 {
      %c0_6 = arith.constant 0 : index
      %c0_7 = arith.constant 0 : index
      %8 = vector.load %arg2[%c0_6, %c0_7] : memref<16x32xf32, #tpu.memory_space<vmem>>, vector<16x32xf32>
      %9 = arith.mulf %8, %8 : vector<16x32xf32>
      %cst_8 = arith.constant dense<0.000000e+00> : vector<16xf32>
      %10 = vector.multi_reduction <add>, %9, %cst_8 [1] : vector<16x32xf32> to vector<16xf32>
      %11 = vector.shape_cast %10 : vector<16xf32> to vector<16x1xf32>
      %cst_9 = arith.constant 3.200000e+01 : f32
      %12 = vector.broadcast %cst_9 : f32 to vector<16x1xf32>
      %13 = arith.divf %11, %12 : vector<16x1xf32>
      %cst_10 = arith.constant 9.99999974E-6 : f32
      %14 = vector.broadcast %cst_10 : f32 to vector<16x1xf32>
      %15 = arith.addf %13, %14 : vector<16x1xf32>
      %16 = math.rsqrt %15 : vector<16x1xf32>
      %17 = vector.broadcast %16 : vector<16x1xf32> to vector<16x32xf32>
      %18 = arith.mulf %8, %17 : vector<16x32xf32>
      %c0_11 = arith.constant 0 : index
      %c0_12 = arith.constant 0 : index
      %19 = vector.load %arg3[%c0_11, %c0_12] : memref<1x32xf32, #tpu.memory_space<vmem>>, vector<1x32xf32>
      %20 = vector.broadcast %19 : vector<1x32xf32> to vector<16x32xf32>
      %21 = arith.mulf %18, %20 : vector<16x32xf32>
      %22 = arith.truncf %21 : vector<16x32xf32> to vector<16x32xbf16>
      %c0_13 = arith.constant 0 : index
      %c0_14 = arith.constant 0 : index
      %23 = vector.load %arg6[%c0_13, %c0_14] : memref<16x32xbf16, #tpu.memory_space<vmem>>, vector<16x32xbf16>
      tpu.vector_store %arg6[%c0_13, %c0_14], %22 {strides = array<i32>} : memref<16x32xbf16, #tpu.memory_space<vmem>>, vector<16x32xbf16>,
    } else {
    }
    %c0 = arith.constant 0 : index
    %c0_1 = arith.constant 0 : index
    %3 = vector.load %arg6[%c0, %c0_1] : memref<16x32xbf16, #tpu.memory_space<vmem>>, vector<16x32xbf16>
    %c0_2 = arith.constant 0 : index
    %c0_3 = arith.constant 0 : index
    %4 = vector.load %arg4[%c0_2, %c0_3] : memref<32x64xbf16, #tpu.memory_space<vmem>>, vector<32x64xbf16>
    %cst = arith.constant dense<0.000000e+00> : vector<16x64xf32>
    %5 = tpu.matmul %3, %4, %cst {dimension_numbers = #tpu.dot_dimension_numbers<[1], [0], [0], [1], [0, 0, 1, 1], [], []>} : vector<16x32xbf16>, vector<32x64xbf16>, vector<16x64xf32> -> vector<16x64xf32>
    %6 = arith.truncf %5 : vector<16x64xf32> to vector<16x64xbf16>
    %c0_4 = arith.constant 0 : index
    %c0_5 = arith.constant 0 : index
    %7 = vector.load %arg5[%c0_4, %c0_5] : memref<16x64xbf16, #tpu.memory_space<vmem>>, vector<16x64xbf16>
    tpu.vector_store %arg5[%c0_4, %c0_5], %6 {strides = array<i32>} : memref<16x64xbf16, #tpu.memory_space<vmem>>, vector<16x64xbf16>,
    return
  }
  func.func @transform_0(%arg0: i32, %arg1: i32) -> (i32, i32) {
    %c0_i32 = arith.constant 0 : i32
    %c0_i32_0 = arith.constant 0 : i32
    return %arg0, %c0_i32 : i32, i32
  }
  func.func @transform_1(%arg0: i32, %arg1: i32) -> (i32, i32) {
    %c0_i32 = arith.constant 0 : i32
    %c0_i32_0 = arith.constant 0 : i32
    %c0_i32_1 = arith.constant 0 : i32
    return %c0_i32, %c0_i32_0 : i32, i32
  }
  func.func @transform_2(%arg0: i32, %arg1: i32) -> (i32, i32) {
    %c0_i32 = arith.constant 0 : i32
    %c0_i32_0 = arith.constant 0 : i32
    return %c0_i32, %arg1 : i32, i32
  }
  func.func @transform_3(%arg0: i32, %arg1: i32) -> (i32, i32) {
    %c0_i32 = arith.constant 0 : i32
    return %arg0, %arg1 : i32, i32
  }
}

</mosaic_0001>

<llo_original>
// kernel: tpu_custom_call.1
$region0: #{tpu_custom_call.1}
  #allocation0 [shape = 'u32[]', space=smem, size = 0x4, offset = 0x4, fixed_abs, tag = 'smem constant byte address 0x4 - core index']
  #allocation1 [shape = 'u32[144,128]{1,0:T(1,128)}', space=vmem, size = 0x12000, scoped, tag = 'internal scratch']
  #allocation2 [shape = 'bf16[16,32]{1,0:T(16,128)(2,1)}', space=vmem, size = 0x1000, scoped, tag = 'scratch operand']
  %s0 = inlined_call_operand.hbm [shape: f32[16,32], index: 0, kind: input, shape index: {}]
  %s1 = inlined_call_operand.vmem [shape: f32[1,32], index: 1, kind: input, shape index: {}]
  %s2 = inlined_call_operand.hbm [shape: bf16[32,64], index: 2, kind: input, shape index: {}]
  %s3 = inlined_call_operand.hbm [shape: bf16[16,64], index: 3, kind: output, shape index: {}]
  %s4 = sld [smem:[#allocation0]]
  $region34: #{tpu_custom_call.1} parent=0
    _
  %s6 = ssub.s32 1, %s4
  %s7 = scalar_select 0, %s6, %s4
  $region1: #{tpu_custom_call.1} parent=0
    #allocation3 [shape = 'u8[8192]{0}', space=vmem, size = 0x2000, scoped, tag = 'input window, operand 0, single buffered']
    #allocation4 [shape = 's32[1]{0}', space=sflag, size = 0x4, scoped, tag = 'scoped memory for tpu_custom_call.1']
    #allocation5 [shape = 's32[1]{0}', space=sflag, size = 0x4, scoped, tag = 'scoped memory for tpu_custom_call.1']
    #allocation6 [shape = 'u8[8192]{0}', space=vmem, size = 0x2000, scoped, tag = 'input window, operand 2, single buffered']
    #allocation7 [shape = 's32[1]{0}', space=sflag, size = 0x4, scoped, tag = 'scoped memory for tpu_custom_call.1']
    #allocation8 [shape = 'u8[4096]{0}', space=vmem, size = 0x1000, scoped, tag = 'output window, operand 0, single buffered']
    %8 = vsyncpa [#allocation4], 0
    %9 = vsyncpa [#allocation7], 0
    %10 = vsyncpa [#allocation5], 0
    // Predicated region
    $region2: #{tpu_custom_call.1} parent=1 // pred_check
      _
    $region3: #{tpu_custom_call.1} parent=1 // pred_check_branch
      %12 = sbr.rel (0) target = $region5
    $region4: #{tpu_custom_call.1} parent=1 // pred_region
      %s14 = ssub.s32 256, 256
      %15 = vsyncadd [#allocation4], %s14
      %s16 = sshll.u32 [#allocation3], 4
      %s17 = int_to_ptr.vmem [resolvable:$true] %s16
      %22 = dma.hbm_to_vmem [thread:$0]  %s0, 256, %s17, [#allocation4], 128, 128, 8
    $region5: #{tpu_custom_call.1} parent=1 // pred_fallthru
      _
    // Predicated region
    $region6: #{tpu_custom_call.1} parent=1 // pred_check
      _
    $region7: #{tpu_custom_call.1} parent=1 // pred_check_branch
      %24 = sbr.rel (0) target = $region9
    $region8: #{tpu_custom_call.1} parent=1 // pred_region
      _
    $region9: #{tpu_custom_call.1} parent=1 // pred_fallthru
      _
    // Predicated region
    $region10: #{tpu_custom_call.1} parent=1 // pred_check
      _
    $region11: #{tpu_custom_call.1} parent=1 // pred_check_branch
      %26 = sbr.rel (0) target = $region13
    $region12: #{tpu_custom_call.1} parent=1 // pred_region
      %s28 = ssub.s32 256, 256
      %29 = vsyncadd [#allocation7], %s28
      %s30 = sshll.u32 [#allocation6], 4
      %s31 = int_to_ptr.vmem [resolvable:$true] %s30
      %36 = dma.hbm_to_vmem [thread:$0]  %s2, 256, %s31, [#allocation7], 64, 64, 4
    $region13: #{tpu_custom_call.1} parent=1 // pred_fallthru
      _
    // Predicated region
    $region14: #{tpu_custom_call.1} parent=1 // pred_check
      _
    $region15: #{tpu_custom_call.1} parent=1 // pred_check_branch
      %38 = sbr.rel (0) target = $region17
    $region16: #{tpu_custom_call.1} parent=1 // pred_region
      %39 = dma.done [#allocation4], 256
    $region17: #{tpu_custom_call.1} parent=1 // pred_fallthru
      _
    // Predicated region
    $region18: #{tpu_custom_call.1} parent=1 // pred_check
      _
    $region19: #{tpu_custom_call.1} parent=1 // pred_check_branch
      %41 = sbr.rel (0) target = $region21
    $region20: #{tpu_custom_call.1} parent=1 // pred_region
      %42 = dma.done [#allocation7], 256
    $region21: #{tpu_custom_call.1} parent=1 // pred_fallthru
      _
    %p44 = scmp.eq.s32.totalorder 0, 0
    // Predicated region
    $region22: #{tpu_custom_call.1} parent=1 // pred_check
      %p45 = pneg %p44
    $region23: #{tpu_custom_call.1} parent=1 // pred_check_branch
      %47 = sbr.rel (%p45) target = $region25
    $region24: #{tpu_custom_call.1} parent=1 // pred_region
      %v48 = vld [vmem:[#allocation3] sm:$0xff]
      %v49 = vld [vmem:[#allocation3 + $0x8] sm:$0xff]
      %v50 = vmul.f32 %v48, %v48
      %v51 = vmul.f32 %v49, %v49
      %vm52 = vcmask 261120
      %v53 = vsel %vm52, %v50, 0.0
      %54 = vadd.xlane.f32.xlu0 %v53
      %v55 = vpop.xlane.xlu0 %54
      %v56 = vsel %vm52, %v51, 0.0
      %57 = vadd.xlane.f32.xlu0 %v56
      %v58 = vpop.xlane.xlu0 %57
      %v59 = vrcp.pop 32.0
      %v60 = vmul.f32 %v55, %v59
      %v61 = vmul.f32 %v58, %v59
      %v62 = vadd.f32 %v60, 1e-05
      %v63 = vadd.f32 %v61, 1e-05
      %v64 = vrsqrt.pop %v62
      %v65 = vrsqrt.pop %v63
      %v66 = vmul.f32 %v48, %v64
      %v67 = vmul.f32 %v49, %v65
      %v68 = vld [vmem:[%s1] sm:$0x1]
      %v70 = vlaneseq
      %v71 = vshrl.u32 %v70, 7
      %v72 = vsub.s32 0, %v71
      %v73 = vrot.slane %v68, %v72
      %v75 = vmul.f32 %v66, %v73
      %v76 = vmul.f32 %v67, %v73
      %v77 = vpack.c.bf16 %v76, %v75
      %78 = vst.msk [vmem:[#allocation2] sm:$0xff] %vm52, %v77
    $region25: #{tpu_custom_call.1} parent=1 // pred_fallthru
      _
    %v79 = vld [vmem:[#allocation2] sm:$0xff]
    %v80 = vld [vmem:[#allocation6] sm:$0xf]
    %v81 = vld [vmem:[#allocation6 + $0x4] sm:$0xf]
    %v82 = vld [vmem:[#allocation6 + $0x8] sm:$0xf]
    %v83 = vld [vmem:[#allocation6 + $0xc] sm:$0xf]
    %v88 = vunpack.c.l.b16 %v80
    %v89 = vunpack.c.l.b16 %v81
    %v90 = vunpack.c.l.b16 %v82
    %v91 = vunpack.c.l.b16 %v83
    %v92 = vpack.c.b16 %v89, %v88
    %v93 = vpack.c.b16 %v91, %v90
    %vm96 = vcmask 261120
    %v98 = vsel %vm96, %v79, 0
    %100 = vmatprep.subr.bf16.mxu0 0
    %101 = vmatpush1.bf16.msra.mxu0 %v92
    %102 = vmatprep.subr.bf16.mxu0 0
    %103 = vmatpush1.bf16.msra.mxu0 %v93
    %104 = vmatprep.subr.bf16.mxu0 0
    %105 = vmatpush1.bf16.msra.mxu0 0
    %106 = vmatprep.subr.bf16.mxu0 0
    %107 = vmatpush1.bf16.msra.mxu0 0
    %108 = vmatprep.subr.bf16.mxu0 0
    %109 = vmatpush1.bf16.msra.mxu0 0
    %110 = vmatprep.subr.bf16.mxu0 0
    %111 = vmatpush1.bf16.msra.mxu0 0
    %112 = vmatprep.subr.bf16.mxu0 0
    %113 = vmatpush1.bf16.msra.mxu0 0
    %114 = vmatprep.subr.bf16.mxu0 0
    %115 = vmatpush1.bf16.msra.mxu0 0
    %116 = vmatprep.subr.bf16.mxu0 0
    %117 = vmatpush1.bf16.msra.mxu0 0
    %118 = vmatprep.subr.bf16.mxu0 0
    %119 = vmatpush1.bf16.msra.mxu0 0
    %120 = vmatprep.subr.bf16.mxu0 0
    %121 = vmatpush1.bf16.msra.mxu0 0
    %122 = vmatprep.subr.bf16.mxu0 0
    %123 = vmatpush1.bf16.msra.mxu0 0
    %124 = vmatprep.subr.bf16.mxu0 0
    %125 = vmatpush1.bf16.msra.mxu0 0
    %126 = vmatprep.subr.bf16.mxu0 0
    %127 = vmatpush1.bf16.msra.mxu0 0
    %128 = vmatprep.subr.bf16.mxu0 0
    %129 = vmatpush1.bf16.msra.mxu0 0
    %130 = vmatprep.subr.bf16.mxu0 0
    %131 = vmatpush1.bf16.msra.mxu0 0
    %132 = vmatprep.mubr.bf16.mxu0 0
    %133 = vmatmul.mubr.bf16.gmra.mrb[0].mxu0 %v98
    %v134 = vpop.f32.mrb[0].mxu0
    %v135 = vadd.f32 0.0, %v134
    %v136 = vpop.f32.mrb[0].mxu0
    %v137 = vpop.f32.mrb[0].mxu0
    %v138 = vadd.f32 0.0, %v137
    %v139 = vpop.f32.mrb[0].mxu0
    %140 = vdwg.mxu0
    %v141 = vpack.c.bf16 %v138, %v135
    %v143 = vunpack.c.l.b16 %v141
    %v144 = vunpack.c.h.b16 %v141
    %v145 = vpack.c.b16 %v143, %v143
    %v146 = vpack.c.b16 %v144, %v144
    %vm149 = vcmask 519168
    %150 = vst.msk [vmem:[#allocation8] sm:$0xf] %vm149, %v145
    %151 = vst.msk [vmem:[#allocation8 + $0x4] sm:$0xf] %vm149, %v146
    // Predicated region
    $region26: #{tpu_custom_call.1} parent=1 // pred_check
      _
    $region27: #{tpu_custom_call.1} parent=1 // pred_check_branch
      %153 = sbr.rel (0) target = $region29
    $region28: #{tpu_custom_call.1} parent=1 // pred_region
      %s155 = ssub.s32 128, 128
      %156 = vsyncadd [#allocation5], %s155
      %s157 = sshll.u32 [#allocation8], 4
      %s158 = int_to_ptr.vmem [resolvable:$true] %s157
      %163 = dma.vmem_to_hbm [thread:$0]  %s158, 128, %s3, [#allocation5], 64, 64, 4
    $region29: #{tpu_custom_call.1} parent=1 // pred_fallthru
      _
    // Predicated region
    $region30: #{tpu_custom_call.1} parent=1 // pred_check
      _
    $region31: #{tpu_custom_call.1} parent=1 // pred_check_branch
      %165 = sbr.rel (0) target = $region33
    $region32: #{tpu_custom_call.1} parent=1 // pred_region
      %166 = dma.done [#allocation5], 128
    $region33: #{tpu_custom_call.1} parent=1 // pred_fallthru
      _
    %167 = vsyncpa [#allocation4], 1
    %168 = vsyncpa [#allocation7], 1
    %169 = vsyncpa [#allocation5], 1

</llo_original>
